<compile_context>
chip_gen: v7x
topology: tpu7x:2x2x1
jax: 0.10.0
libtpu: 0.0.40
codegen_flags: <defaults>
</compile_context>

<pallas_src>
import functools

import jax
import jax.numpy as jnp
from jax import lax
from jax.experimental import pallas as pl
from jax.experimental.pallas import tpu as pltpu

# Target lane-padded VMEM bytes per input buffer (x2 for double buffering).
_TARGET_BLOCK_VMEM_BYTES = 8 * 1024 * 1024


def _em_loss_kernel(x_ref, out_ref, *, total_rows, num_classes):
    # x_ref: (tb, C+1) VMEM block of raw logits.
    # out_ref: (8, 128) lane-dense block holding this tile's entropy partial sum.
    i = pl.program_id(0)
    tb, c1 = x_ref.shape
    x = x_ref[...].astype(jnp.float32)

    # Mask the dropped last class column with -inf BEFORE max/exp so its lanes
    # contribute exactly 0 to Z; the where on e*s below kills the 0*(-inf) NaN.
    col_ok = lax.broadcasted_iota(jnp.int32, (tb, c1), 1) < num_classes
    xm = jnp.where(col_ok, x, -jnp.inf)

    # Log-sum-exp entropy: H = log(Z) - (sum_i e_i * s_i) / Z.
    m = jnp.max(xm, axis=1, keepdims=True)                  # (tb, 1)
    s = xm - m
    e = jnp.exp(s)                                          # masked lanes -> exactly 0
    z = jnp.sum(e, axis=1, keepdims=True)                   # >= 1 for valid rows
    w = jnp.sum(jnp.where(col_ok, e * s, 0.0), axis=1, keepdims=True)
    # Exact reciprocal keeps the loss within ~1e-6 of the reference
    # (approx=True would add ~1e-4 relative error for a negligible saving here).
    h = jnp.log(z) - w * pl.reciprocal(z, approx=False)     # (tb, 1) per-row entropy

    # Padded rows of a ragged last tile carry stale-VMEM garbage (possibly
    # NaN/Inf); squash them before the tile-level reduction.
    row_ok = (lax.broadcasted_iota(jnp.int32, (tb, 1), 0) + i * tb) < total_rows
    tile_sum = jnp.sum(jnp.where(row_ok, h, 0.0), axis=0, keepdims=True)  # (1, 1)

    # Lane-dense, (8,128)-aligned store of the per-tile partial sum.
    out_ref[...] = jnp.broadcast_to(tile_sum, out_ref.shape)


def em_loss_for_target(inp, *, block_rows=None):
    """inp: (batch, num_classes + 1) logits. Returns scalar float32 loss."""
    B, C1 = inp.shape
    assert C1 >= 2, "need at least one class after dropping the last column"
    C = C1 - 1

    itemsize = jnp.dtype(inp.dtype).itemsize
    sub = {4: 8, 2: 16, 1: 32}.get(itemsize, 8)      # sublane packing per dtype
    c_pad = -(-C1 // 128) * 128                      # lane-padded class width

    if block_rows is not None:                       # explicit override (tests)
        tb = max(1, min(int(block_rows), B))
        if tb < B:
            tb = -(-tb // sub) * sub
    elif B <= sub:
        tb = B                                       # single tiny tile
    else:
        # Byte-based sizing on the lane-padded VMEM footprint.
        tb = (_TARGET_BLOCK_VMEM_BYTES // (c_pad * itemsize)) // sub * sub
        tb = max(tb, sub)
        # Keep >= 2 tiles so v7x's two TensorCores both get work.
        half_b = -(-B // 2)
        tb = min(tb, -(-half_b // sub) * sub)

    nt = pl.cdiv(B, tb)

    block_vmem_bytes = tb * c_pad * itemsize
    # 2x double-buffered input + tiny output blocks + slack; >= 32 MiB covers
    # v5e's 16 MiB default scoped VMEM while staying within every chip's budget.
    vmem_limit = int(max(32 * 1024 * 1024,
                         2 * block_vmem_bytes + 2 * 8 * 128 * 4 + (1 << 20)))
    # TODO(synk): for vocab-scale C1 (where even tb==sublane blows the VMEM
    # budget) add a second, last, 'arbitrary' grid axis over the class dim with
    # an online log-sum-exp accumulator (running m, Z, sum(e*s) scratch).

    kernel = functools.partial(_em_loss_kernel, total_rows=B, num_classes=C)

    partials = pl.pallas_call(
        kernel,
        out_shape=jax.ShapeDtypeStruct((nt, 8, 128), jnp.float32),
        grid_spec=pltpu.PrefetchScalarGridSpec(
            num_scalar_prefetch=0,
            grid=(nt,),
            in_specs=[pl.BlockSpec((tb, C1), lambda i: (i, 0))],
            out_specs=pl.BlockSpec((None, 8, 128), lambda i: (i, 0, 0)),
        ),
        compiler_params=pltpu.CompilerParams(
            dimension_semantics=("parallel",),
            vmem_limit_bytes=vmem_limit,
        ),
        cost_estimate=pl.CostEstimate(
            flops=7 * B * C1,
            transcendentals=B * c_pad + 2 * B,   # hw evaluates exp on padded lanes
            bytes_accessed=B * C1 * itemsize + nt * 8 * 128 * 4,
        ),
    )(inp)

    # Tiny final reduction over per-tile partial sums + mean over GLOBAL batch.
    return jnp.sum(partials[:, 0, 0]) / jnp.float32(B)


if __name__ == "__main__":
    key = jax.random.PRNGKey(0)

    def reference(x):
        xs = x[:, :-1].astype(jnp.float32)
        p = jax.nn.softmax(xs, axis=1)
        fix = jnp.where(p == 0.0, 1e-6, 0.0)
        return -jnp.mean(jnp.sum(p * jnp.log(p + fix), axis=1))

    k1, k2 = jax.random.split(key)
    # batch=24, 33 logit columns -> softmax over 32 classes after dropping last
    x = jax.random.normal(k1, (24, 33), dtype=jnp.float32)
    x_bf16 = jax.random.normal(k2, (24, 33), dtype=jnp.float32).astype(jnp.bfloat16)

    cases = [
        (x, {}),                       # auto tiling: 2 tiles (v7x dual-TC), ragged 2nd
        (x, {"block_rows": 8}),        # forced multi-tile grid (3 full tiles)
        (x[:20], {"block_rows": 8}),   # ragged last tile (8, 8, 4 valid rows)
        (x_bf16, {}),                  # bf16 input -> 16-row sublane alignment
    ]
    for xi, kw in cases:
        loss = jax.block_until_ready(em_loss_for_target(xi, **kw))
        ref = reference(xi)
        assert jnp.allclose(loss, ref, atol=1e-5, rtol=1e-5), (kw, loss, ref)

    print("KERNEL_OK")
</pallas_src>

<mosaic_0001>
module attributes {stable_mosaic.version = 11 : i64} {
  func.func @_em_loss_kernel(%arg0: i32, %arg1: memref<16x33xf32, #tpu.memory_space<vmem>>, %arg2: memref<1x8x128xf32, #tpu.memory_space<vmem>>) attributes {dimension_semantics = [#tpu.dimension_semantics<parallel>], iteration_bounds = array<i64: 2>, scalar_prefetch = 0 : i64, scratch_operands = 0 : i64, tpu.core_type = #tpu.core_type<tc>, window_params = [{transform_indices = @transform_0, window_bounds = array<i64: 16, 33>}, {transform_indices = @transform_1, window_bounds = array<i64: 1, 8, 128>}]} {
    %c0 = arith.constant 0 : index
    %c0_0 = arith.constant 0 : index
    %0 = vector.load %arg1[%c0, %c0_0] : memref<16x33xf32, #tpu.memory_space<vmem>>, vector<16x33xf32>
    %1 = tpu.iota {dimensions = array<i32: 1>} : vector<16x33xi32>
    %c32_i32 = arith.constant 32 : i32
    %2 = vector.broadcast %c32_i32 : i32 to vector<16x33xi32>
    %3 = arith.cmpi slt, %1, %2 : vector<16x33xi32>
    %cst = arith.constant 0xFF800000 : f32
    %4 = vector.broadcast %cst : f32 to vector<16x33xf32>
    %5 = arith.select %3, %0, %4 : vector<16x33xi1>, vector<16x33xf32>
    %cst_1 = arith.constant dense<0xFF800000> : vector<16xf32>
    %6 = vector.multi_reduction <maximumf>, %5, %cst_1 [1] : vector<16x33xf32> to vector<16xf32>
    %7 = vector.shape_cast %6 : vector<16xf32> to vector<16x1xf32>
    %8 = vector.broadcast %7 : vector<16x1xf32> to vector<16x33xf32>
    %9 = arith.subf %5, %8 : vector<16x33xf32>
    %10 = math.exp %9 : vector<16x33xf32>
    %cst_2 = arith.constant dense<0.000000e+00> : vector<16xf32>
    %11 = vector.multi_reduction <add>, %10, %cst_2 [1] : vector<16x33xf32> to vector<16xf32>
    %12 = vector.shape_cast %11 : vector<16xf32> to vector<16x1xf32>
    %13 = arith.mulf %10, %9 : vector<16x33xf32>
    %cst_3 = arith.constant 0.000000e+00 : f32
    %14 = vector.broadcast %cst_3 : f32 to vector<16x33xf32>
    %15 = arith.select %3, %13, %14 : vector<16x33xi1>, vector<16x33xf32>
    %cst_4 = arith.constant dense<0.000000e+00> : vector<16xf32>
    %16 = vector.multi_reduction <add>, %15, %cst_4 [1] : vector<16x33xf32> to vector<16xf32>
    %17 = vector.shape_cast %16 : vector<16xf32> to vector<16x1xf32>
    %18 = math.log %12 : vector<16x1xf32>
    %19 = tpu.reciprocal %12 : vector<16x1xf32> -> vector<16x1xf32>
    %20 = arith.mulf %17, %19 : vector<16x1xf32>
    %21 = arith.subf %18, %20 : vector<16x1xf32>
    %22 = tpu.iota {dimensions = array<i32: 0>} : vector<16x1xi32>
    %c16_i32 = arith.constant 16 : i32
    %23 = arith.muli %arg0, %c16_i32 : i32
    %24 = vector.broadcast %23 : i32 to vector<16x1xi32>
    %25 = arith.addi %22, %24 : vector<16x1xi32>
    %c24_i32 = arith.constant 24 : i32
    %26 = vector.broadcast %c24_i32 : i32 to vector<16x1xi32>
    %27 = arith.cmpi slt, %25, %26 : vector<16x1xi32>
    %cst_5 = arith.constant 0.000000e+00 : f32
    %28 = vector.broadcast %cst_5 : f32 to vector<16x1xf32>
    %29 = arith.select %27, %21, %28 : vector<16x1xi1>, vector<16x1xf32>
    %cst_6 = arith.constant dense<0.000000e+00> : vector<1xf32>
    %30 = vector.multi_reduction <add>, %29, %cst_6 [0] : vector<16x1xf32> to vector<1xf32>
    %31 = vector.shape_cast %30 : vector<1xf32> to vector<1x1xf32>
    %32 = vector.shape_cast %31 : vector<1x1xf32> to vector<1x1xf32>
    %33 = vector.broadcast %32 : vector<1x1xf32> to vector<8x128xf32>
    %c0_7 = arith.constant 0 : index
    %c0_8 = arith.constant 0 : index
    %c0_9 = arith.constant 0 : index
    %34 = vector.load %arg2[%c0_7, %c0_8, %c0_9] : memref<1x8x128xf32, #tpu.memory_space<vmem>>, vector<1x8x128xf32>
    %35 = vector.shape_cast %34 : vector<1x8x128xf32> to vector<8x128xf32>
    %36 = vector.shape_cast %33 : vector<8x128xf32> to vector<1x8x128xf32>
    tpu.vector_store %arg2[%c0_7, %c0_8, %c0_9], %36 {strides = array<i32>} : memref<1x8x128xf32, #tpu.memory_space<vmem>>, vector<1x8x128xf32>,
    return
  }
  func.func @transform_0(%arg0: i32) -> (i32, i32) {
    %c0_i32 = arith.constant 0 : i32
    %c0_i32_0 = arith.constant 0 : i32
    return %arg0, %c0_i32 : i32, i32
  }
  func.func @transform_1(%arg0: i32) -> (i32, i32, i32) {
    %c0_i32 = arith.constant 0 : i32
    %c0_i32_0 = arith.constant 0 : i32
    %c0_i32_1 = arith.constant 0 : i32
    return %arg0, %c0_i32, %c0_i32_0 : i32, i32, i32
  }
}

</mosaic_0001>

<llo_original>
// kernel: tpu_custom_call.1
$region0: #{tpu_custom_call.1}
  #allocation0 [shape = 'u32[]', space=smem, size = 0x4, offset = 0x4, fixed_abs, tag = 'smem constant byte address 0x4 - core index']
  #allocation1 [shape = 'u32[144,128]{1,0:T(1,128)}', space=vmem, size = 0x12000, scoped, tag = 'internal scratch']
  %s0 = inlined_call_operand.hbm [shape: f32[24,33], index: 0, kind: input, shape index: {}]
  %s1 = inlined_call_operand.hbm [shape: f32[2,8,128], index: 1, kind: output, shape index: {}]
  %s2 = sld [smem:[#allocation0]]
  $region41: #{tpu_custom_call.1} parent=0
    _
  %s4 = ssub.s32 1, %s2
  %s5 = scalar_select 0, %s4, %s2
  $region1: #{tpu_custom_call.1} parent=0
    #allocation2 [shape = 'u8[16384]{0}', space=vmem, size = 0x4000, scoped, tag = 'input window, operand 0']
    #allocation3 [shape = 's32[2]{0}', space=sflag, size = 0x8, scoped, tag = 'scoped memory for tpu_custom_call.1']
    #allocation4 [shape = 's32[2]{0}', space=sflag, size = 0x8, scoped, tag = 'scoped memory for tpu_custom_call.1']
    #allocation5 [shape = 'u8[8192]{0}', space=vmem, size = 0x2000, scoped, tag = 'output window, operand 0']
    %6 = vsyncpa [#allocation3], 0
    %s7 = scalar_lea.sflag [#allocation3], 1
    %8 = vsyncpa %s7, 0
    %9 = vsyncpa [#allocation4], 0
    %s10 = scalar_lea.sflag [#allocation4], 1
    %11 = vsyncpa %s10, 0
    loop: start=0, step=1, limit=4
    $region2: #{tpu_custom_call.1} parent=1 // loop_pre_header
      _
    $region3: #{tpu_custom_call.1} parent=1 // loop_header
      %s13 = sphi 0, %s17
      %p14 = scmp.ge.s32.totalorder %s13, 4
      %s23 = sphi 0, %s25
      %s26 = sphi 0, %s23
      %s27 = sphi 0, %s26
      %s43 = sphi 0, %s27
      %s49 = sphi 0, %s51
      %s52 = sphi 0, %s49
      %s53 = sphi 0, %s52
      %s69 = sphi 0, %s53
    $region4: #{tpu_custom_call.1} parent=1 // loop_header_branch
      %16 = sbr.rel (%p14) target = $region8
    $region5: #{tpu_custom_call.1} parent=1 // loop_body
      %s18 = ssub.s32 %s13, 1
      %s19 = ssub.s32 %s13, 2
      %s20 = sadd.s32 %s13, 1
      %s21 = ssub.s32 %s13, %s20
      %p22 = scmp.eq.s32.totalorder %s21, 0
      %s24 = sadd.s32 %s23, 1
      %s25 = scalar_select %p22, %s23, %s24
      %p28 = pneg %p22
      %p29 = scmp.eq.s32.totalorder %s13, 1
      %p30 = por %p28, %p29
      %p31 = scmp.ne.s32.totalorder %s23, %s26
      %p32 = scmp.eq.s32.totalorder %s13, 0
      %p33 = por %p31, %p32
      %p34 = scmp.ne.s32.totalorder %s23, %s26
      %p35 = scmp.eq.s32.totalorder %s18, 1
      %p36 = por %p34, %p35
      %p37 = scmp.ne.s32.totalorder %s26, %s27
      %p38 = scmp.eq.s32.totalorder %s18, 0
      %p39 = por %p37, %p38
      %p40 = scmp.ne.s32.totalorder %s26, %s27
      %p41 = scmp.eq.s32.totalorder %s19, 1
      %p42 = por %p40, %p41
      %p44 = scmp.ne.s32.totalorder %s27, %s43
      %p45 = scmp.eq.s32.totalorder %s19, 0
      %p46 = por %p44, %p45
      %s47 = ssub.s32 %s13, %s20
      %p48 = scmp.eq.s32.totalorder %s47, 0
      %s50 = sadd.s32 %s49, 1
      %s51 = scalar_select %p48, %s49, %s50
      %p54 = pneg %p48
      %p55 = scmp.eq.s32.totalorder %s13, 1
      %p56 = por %p54, %p55
      %p57 = scmp.ne.s32.totalorder %s49, %s52
      %p58 = scmp.eq.s32.totalorder %s13, 0
      %p59 = por %p57, %p58
      %p60 = scmp.ne.s32.totalorder %s49, %s52
      %p61 = scmp.eq.s32.totalorder %s18, 1
      %p62 = por %p60, %p61
      %p63 = scmp.ne.s32.totalorder %s52, %s53
      %p64 = scmp.eq.s32.totalorder %s18, 0
      %p65 = por %p63, %p64
      %p66 = scmp.ne.s32.totalorder %s52, %s53
      %p67 = scmp.eq.s32.totalorder %s19, 1
      %p68 = por %p66, %p67
      %p70 = scmp.ne.s32.totalorder %s53, %s69
      %p71 = scmp.eq.s32.totalorder %s19, 0
      %p72 = por %p70, %p71
      %p73 = scmp.le.s32.totalorder 1, %s13
      %p74 = scmp.lt.s32.totalorder %s13, 3
      %p75 = pnand %p73, %p74
      %p76 = pneg %p75
      // Predicated region
      $region9: #{tpu_custom_call.1} parent=5 // pred_check
        _
      $region10: #{tpu_custom_call.1} parent=5 // pred_check_branch
        %78 = sbr.rel (%p75) target = $region12
      $region11: #{tpu_custom_call.1} parent=5 // pred_region
        %s79 = ssub.s32 %s13, 1
      $region12: #{tpu_custom_call.1} parent=5 // pred_fallthru
        _
      %p80 = scmp.lt.s32.totalorder %s13, 2
      // Predicated region
      $region13: #{tpu_custom_call.1} parent=5 // pred_check
        %p81 = pneg %p80
      $region14: #{tpu_custom_call.1} parent=5 // pred_check_branch
        %83 = sbr.rel (%p81) target = $region16
      $region15: #{tpu_custom_call.1} parent=5 // pred_region
        // Predicated region
        $region17: #{tpu_custom_call.1} parent=15 // pred_check
          %p84 = pneg %p33
        $region18: #{tpu_custom_call.1} parent=15 // pred_check_branch
          %86 = sbr.rel (%p84) target = $region20
        $region19: #{tpu_custom_call.1} parent=15 // pred_region
          %s87 = sand.u32 %s23, 1
          %s88 = scalar_lea.sflag [#allocation3], %s87
          %s89 = sand.u32 %s23, 1
          %s90 = smul.addr %s89, 16
          %s91 = scalar_lea.vmem [#allocation2], %s90
          %s92 = smul.u32 2, %s13
          %s93 = ssub.s32 3, %s92
          %p94 = scmp.lt.s32.totalorder %s93, 2
          %s95 = scalar_select %p94, %s93, 2
          %s96 = smul.u32 128, %s95
          %s98 = ssub.s32 256, %s96
          %99 = vsyncadd %s88, %s98
          %p100 = scmp.ne.s32.totalorder 0, %s96
          %s101 = smul.addr %s92, 128
          %s102 = scalar_lea.hbm %s0, %s101
          %s103 = smul.u32 8, %s95
          %s104 = sshll.u32 %s91, 4
          %s105 = int_to_ptr.vmem [resolvable:$true] %s104
          %s106 = sshll.u32 %s103, 4
          %110 = dma.hbm_to_vmem [thread:$0]  (%p100), %s102, %s106, %s105, %s88, 128, 128, 8
        $region20: #{tpu_custom_call.1} parent=15 // pred_fallthru
          _
      $region16: #{tpu_custom_call.1} parent=5 // pred_fallthru
        _
      %p111 = scmp.le.s32.totalorder 1, %s13
      %p112 = scmp.lt.s32.totalorder %s13, 3
      %p113 = pnand %p111, %p112
      %p114 = pneg %p113
      // Predicated region
      $region21: #{tpu_custom_call.1} parent=5 // pred_check
        _
      $region22: #{tpu_custom_call.1} parent=5 // pred_check_branch
        %116 = sbr.rel (%p113) target = $region24
      $region23: #{tpu_custom_call.1} parent=5 // pred_region
        %s117 = ssub.s32 %s13, 1
        %s118 = sand.u32 %s26, 1
        %s119 = scalar_lea.sflag [#allocation3], %s118
        %s120 = sand.u32 %s26, 1
        %s121 = smul.addr %s120, 16
        %s122 = scalar_lea.vmem [#allocation2], %s121
        // Predicated region
        $region25: #{tpu_custom_call.1} parent=23 // pred_check
          %p123 = pneg %p39
        $region26: #{tpu_custom_call.1} parent=23 // pred_check_branch
          %125 = sbr.rel (%p123) target = $region28
        $region27: #{tpu_custom_call.1} parent=23 // pred_region
          %126 = dma.done %s119, 256
        $region28: #{tpu_custom_call.1} parent=23 // pred_fallthru
          _
        %s127 = sand.u32 %s26, 1
        %s128 = scalar_lea.sflag [#allocation3], %s127
        %s129 = sand.u32 %s26, 1
        %s130 = smul.addr %s129, 16
        %s131 = scalar_lea.vmem [#allocation2], %s130
        %p132 = pneg %p39
        %p133 = pneg %p36
        %p134 = pneg %p65
        %p135 = pneg %p62
        %s136 = sand.u32 %s52, 1
        %s137 = scalar_lea.sflag [#allocation4], %s136
        %s138 = sand.u32 %s52, 1
        %s139 = smul.addr %s138, 8
        %s140 = scalar_lea.vmem [#allocation5], %s139
        %s141 = smul.u32 2, %s18
        %s142 = ssub.s32 3, %s141
        %p143 = scmp.lt.s32.totalorder %s142, 2
        %s144 = scalar_select %p143, %s142, 2
        %s145 = smul.u32 128, %s144
        %v146 = vld [vmem:[%s122] sm:$0xff]
        %v147 = vld [vmem:[%s122 + $0x8] sm:$0xff]
        %v148 = vlaneseq
        %v149 = vand.u32 %v148, 127
        %vm150 = vcmp.lt.s32.totalorder %v149, 32
        %v151 = vsel %vm150, %v146, -inf
        %v152 = vsel %vm150, %v147, -inf
        %vm153 = vcmask 269312
        %v154 = vsel %vm153, %v151, -inf
        %155 = vmax.xlane.f32.xlu0 %v154
        %v156 = vpop.xlane.xlu0 %155
        %v157 = vsel %vm153, %v152, -inf
        %158 = vmax.xlane.f32.xlu0 %v157
        %v159 = vpop.xlane.xlu0 %158
        %v160 = vsub.f32 %v151, %v156
        %v161 = vsub.f32 %v152, %v159
        %v162 = vmul.f32 %v160, 1.442695
        %v163 = vpow.pop %v162
        %v164 = vmul.f32 %v161, 1.442695
        %v165 = vpow.pop %v164
        %v166 = vsel %vm153, %v163, 0.0
        %167 = vadd.xlane.f32.xlu0 %v166
        %v168 = vpop.xlane.xlu0 %167
        %v169 = vsel %vm153, %v165, 0.0
        %170 = vadd.xlane.f32.xlu0 %v169
        %v171 = vpop.xlane.xlu0 %170
        %v172 = vmul.f32 %v163, %v160
        %v173 = vmul.f32 %v165, %v161
        %v174 = vsel %vm150, %v172, 0.0
        %v175 = vsel %vm150, %v173, 0.0
        %v176 = vsel %vm153, %v174, 0.0
        %177 = vadd.xlane.f32.xlu0 %v176
        %v178 = vpop.xlane.xlu0 %177
        %v179 = vsel %vm153, %v175, 0.0
        %180 = vadd.xlane.f32.xlu0 %v179
        %v181 = vpop.xlane.xlu0 %180
        %v182 = vlog2.pop %v168
        %v183 = vmul.f32 %v182, 0.6931472
        %v184 = vlog2.pop %v171
        %v185 = vmul.f32 %v184, 0.6931472
        %v186 = vrcp.pop %v168
        %v187 = vrcp.pop %v171
        %v188 = vmul.f32 %v178, %v186
        %v189 = vmul.f32 %v181, %v187
        %v190 = vsub.f32 %v183, %v188
        %v191 = vsub.f32 %v185, %v189
        %v192 = vlaneseq
        %v193 = vshrl.u32 %v192, 7
        %v194 = vadd.s32 %v193, 8
        %s195 = smul.u32 %s18, 16
        %v196 = vstv %s195
        %v197 = vadd.s32 %v193, %v196
        %v198 = vadd.s32 %v194, %v196
        %vm199 = vcmp.lt.s32.totalorder %v197, 24
        %vm200 = vcmp.lt.s32.totalorder %v198, 24
        %v201 = vsel %vm199, %v190, 0.0
        %v202 = vsel %vm200, %v191, 0.0
        %v203 = vadd.f32 %v201, %v202
        %v204 = vrot.slane %v203, 4
        %v205 = vadd.f32 %v203, %v204
        %v206 = vrot.slane %v205, 2
        %v207 = vadd.f32 %v205, %v206
        %v208 = vrot.slane %v207, 1
        %v209 = vadd.f32 %v207, %v208
        %210 = vst [vmem:[%s140] sm:$0xff] %v209
        %s211 = sand.u32 %s52, 1
        %s212 = scalar_lea.sflag [#allocation4], %s211
        %s213 = sand.u32 %s52, 1
        %s214 = smul.addr %s213, 8
        %s215 = scalar_lea.vmem [#allocation5], %s214
        // Predicated region
        $region29: #{tpu_custom_call.1} parent=23 // pred_check
          %p216 = pneg %p62
        $region30: #{tpu_custom_call.1} parent=23 // pred_check_branch
          %218 = sbr.rel (%p216) target = $region32
        $region31: #{tpu_custom_call.1} parent=23 // pred_region
          %s220 = ssub.s32 128, 128
          %221 = vsyncadd %s212, %s220
          %s222 = smul.addr %s18, 128
          %s223 = scalar_lea.hbm %s1, %s222
          %s225 = sshll.u32 %s215, 4
          %s226 = int_to_ptr.vmem [resolvable:$true] %s225
          %228 = dma.vmem_to_hbm [thread:$0]  %s226, 128, %s223, %s212
        $region32: #{tpu_custom_call.1} parent=23 // pred_fallthru
          _
      $region24: #{tpu_custom_call.1} parent=5 // pred_fallthru
        _
      %p229 = scmp.le.s32.totalorder 2, %s13
      // Predicated region
      $region33: #{tpu_custom_call.1} parent=5 // pred_check
        %p230 = pneg %p229
      $region34: #{tpu_custom_call.1} parent=5 // pred_check_branch
        %232 = sbr.rel (%p230) target = $region36
      $region35: #{tpu_custom_call.1} parent=5 // pred_region
        %s233 = ssub.s32 %s13, 2
        // Predicated region
        $region37: #{tpu_custom_call.1} parent=35 // pred_check
          %p234 = pneg %p68
        $region38: #{tpu_custom_call.1} parent=35 // pred_check_branch
          %236 = sbr.rel (%p234) target = $region40
        $region39: #{tpu_custom_call.1} parent=35 // pred_region
          %s237 = sand.u32 %s53, 1
          %s238 = scalar_lea.sflag [#allocation4], %s237
          %s239 = sand.u32 %s53, 1
          %s240 = smul.addr %s239, 8
          %s241 = scalar_lea.vmem [#allocation5], %s240
          %242 = dma.done %s238, 128
        $region40: #{tpu_custom_call.1} parent=35 // pred_fallthru
          _
      $region36: #{tpu_custom_call.1} parent=5 // pred_fallthru
        _
    $region6: #{tpu_custom_call.1} parent=1 // loop_footer
      %s17 = sadd.s32 1, %s13
    $region7: #{tpu_custom_call.1} parent=1 // loop_footer_branch
      %12 = sbr.rel target = $region3
    $region8: #{tpu_custom_call.1} parent=1 // loop_exit
      _
    %243 = vsyncpa [#allocation3], 1
    %s244 = scalar_lea.sflag [#allocation3], 1
    %245 = vsyncpa %s244, 1
    %246 = vsyncpa [#allocation4], 1
    %s247 = scalar_lea.sflag [#allocation4], 1
    %248 = vsyncpa %s247, 1

</llo_original>
